<compile_context>
chip_gen: v7x
topology: tpu7x:2x2x1
jax: 0.10.0
libtpu: 0.0.40
codegen_flags: <defaults>
</compile_context>

<pallas_src>
from functools import partial

import jax
import jax.numpy as jnp
from jax import lax
from jax.experimental import pallas as pl
from jax.experimental.pallas import tpu as pltpu


_MIB = 1024 * 1024
_MAX_TK = 8192                      # lanes (review: push TK to 4096-8192)
_MIN_MULTISTEP_BYTES = 2 * _MIB     # force >=2 K steps above this feature size


# --------------------------------------------------------------------------
# Hardware-aware sizing helpers.
# --------------------------------------------------------------------------
def _vmem_capacity_bytes():
    """Physical VMEM per TensorCore (128 MiB v5e/v6e, 64 MiB v7x)."""
    try:
        return int(pltpu.get_tpu_info().vmem_capacity_bytes)
    except Exception:
        return 64 * _MIB            # v7x-safe fallback


def _sublane_multiple(dtype):
    """Native sublane packing: 8 rows f32, 16 rows bf16, 32 rows int8/fp8."""
    return max(8, 8 * (4 // jnp.dtype(dtype).itemsize))


def _vmem_limit_bytes(n_pad, tk, itemsize, out_bytes, vmem_cap):
    """Explicit scoped-VMEM limit: working set + headroom, below physical."""
    working = (2 * n_pad * tk * itemsize        # double-buffered feature tile
               + n_pad * n_pad * 4              # f32 accumulator scratch
               + out_bytes)                     # output / target VMEM buffers
    return int(min(vmem_cap - 4 * _MIB, max(32 * _MIB, working + 8 * _MIB)))


def _pick_tiling(n_pad, m, itemsize, vmem_cap):
    """Choose (tk, kt, m_pad, num_partials).

    tk is a multiple of 128 lanes.  Option A picks the largest tk (within the
    VMEM tile budget, <= _MAX_TK) that exactly divides the 128-rounded K
    extent, so the feature matrix is never re-materialized as a padded copy
    in HBM.  Option B (bounded K padding) only triggers when option A would
    explode the step count (e.g. prime-ish K) and the pad stays <= 1/16 of K.
    >=2 steps are forced for non-trivial feature sizes so the pipeline can
    overlap DMA with the MXU.
    """
    m128 = ((m + 127) // 128) * 128
    q = m128 // 128                             # K extent in 128-lane units

    # Double-buffered feature-tile budget: v7x (64 MiB VMEM) -> ~21 MiB,
    # v5e/v6e (128 MiB VMEM) -> 32 MiB.  Leaves room for acc/out/compiler.
    tile_budget = min(vmem_cap // 3, 32 * _MIB)
    cap_s = tile_budget // (2 * n_pad * itemsize * 128)
    cap_s = max(1, min(cap_s, _MAX_TK // 128))  # tk cap, in 128-lane units

    feat_bytes = n_pad * m128 * itemsize
    need_multi = feat_bytes > _MIN_MULTISTEP_BYTES and q > 1

    def score(kt):
        # Fewer grid steps is better; mildly prefer an even count so the
        # two-TensorCore partial split (kt >= 4 and even) can engage on v7x.
        return kt if (kt % 2 == 0 or kt < 4) else kt * 1.49

    # Option A: tk divides m128 exactly (no K padding of F).
    s_a, kt_a = 1, q
    for s in range(1, q + 1):
        if q % s or s > cap_s:
            continue
        kt = q // s
        if need_multi and kt < 2:
            continue
        if score(kt) < score(kt_a):
            s_a, kt_a = s, kt

    # Option B: pad K up to a multiple of a budget-sized tk.
    s_b = min(cap_s, q)
    kt_b = -(-q // s_b)
    if need_multi and kt_b < 2:
        kt_b = 2
        s_b = -(-q // 2)
    pad_lanes_b = kt_b * s_b - q

    if kt_a > max(4, 2 * kt_b) and pad_lanes_b * 16 <= q:
        s, kt, m_pad = s_b, kt_b, kt_b * s_b * 128
    else:
        s, kt, m_pad = s_a, kt_a, m128

    tk = 128 * s
    # v7x 2-TensorCore partial-accumulation split over K (each core gets >=2
    # pipelined steps).  On 1-TC chips the leading "parallel" axis just runs
    # sequentially with the same total work.
    num_partials = 2 if (kt >= 4 and kt % 2 == 0) else 1
    return tk, kt, m_pad, num_partials


def _prep_features(x, use_bf16):
    """NCHW -> (near-)unpadded (n_pad, m_pad) feature matrix + tiling info."""
    a, b, c, d = x.shape
    n, m = a * b, c * d
    feats = x.reshape(n, m)
    if use_bf16 and feats.dtype == jnp.float32:
        # Opt-in fast path: halves HBM traffic everywhere and recovers full
        # MXU rate on v5e (no native f32 MXU); accumulation stays f32.
        feats = feats.astype(jnp.bfloat16)
    itemsize = jnp.dtype(feats.dtype).itemsize
    sub = _sublane_multiple(feats.dtype)
    n_pad = -(-n // sub) * sub
    vmem_cap = _vmem_capacity_bytes()
    tk, kt, m_pad, num_partials = _pick_tiling(n_pad, m, itemsize, vmem_cap)
    if n_pad != n or m_pad != m:
        # Zero rows / zero K-columns do not change F @ F.T.  With the
        # divisor-based tk this pads at most 127 columns (plus a few rows);
        # for common spatial sizes no pad (and no extra copy of F) occurs.
        feats = jnp.pad(feats, ((0, n_pad - n), (0, m_pad - m)))
    return feats, n, m, n_pad, m_pad, tk, kt, num_partials, vmem_cap


# --------------------------------------------------------------------------
# Kernel 1: K-tiled (per-core partial) Gram    G_p = sum_k F_k @ F_k.T * scale
# --------------------------------------------------------------------------
def _gram_partial_kernel(feat_ref, g_ref, acc_ref, *, inv_denom):
    k = pl.program_id(1)

    @pl.when(k == 0)
    def _():
        acc_ref[...] = jnp.zeros_like(acc_ref)

    f = feat_ref[...]                               # (n_pad, tk), native dtype
    # Contract the last dim of both operands: no materialized f.T, MXU-direct,
    # f32 accumulation via preferred_element_type.
    acc_ref[...] += lax.dot_general(
        f, f,
        dimension_numbers=(((1,), (1,)), ((), ())),
        preferred_element_type=jnp.float32,
    )

    @pl.when(k == pl.num_programs(1) - 1)
    def _():
        g_ref[...] = acc_ref[...] * inv_denom


def _call_gram_kernel(feats, n_pad, tk, kt, num_partials, inv_denom, vmem_cap):
    """Run the partial-Gram kernel; returns (P, n_pad, n_pad) scaled partials."""
    itemsize = jnp.dtype(feats.dtype).itemsize
    ktp = kt // num_partials

    out = pl.pallas_call(
        partial(_gram_partial_kernel, inv_denom=inv_denom),
        out_shape=jax.ShapeDtypeStruct((num_partials * n_pad, n_pad), jnp.float32),
        grid_spec=pltpu.PrefetchScalarGridSpec(
            num_scalar_prefetch=0,
            grid=(num_partials, ktp),               # (cores, K steps per core)
            in_specs=[pl.BlockSpec((n_pad, tk), lambda p, k: (0, p * ktp + k))],
            out_specs=pl.BlockSpec((n_pad, n_pad), lambda p, k: (p, 0)),
            scratch_shapes=[pltpu.VMEM((n_pad, n_pad), jnp.float32)],
        ),
        compiler_params=pltpu.CompilerParams(
            # leading axis parallel (v7x megacore), K is a reduction axis
            dimension_semantics=("parallel", "arbitrary"),
            vmem_limit_bytes=_vmem_limit_bytes(
                n_pad, tk, itemsize, 2 * n_pad * n_pad * 4, vmem_cap),
        ),
        cost_estimate=pl.CostEstimate(
            flops=2 * n_pad * n_pad * kt * tk,
            transcendentals=0,
            bytes_accessed=feats.size * itemsize
            + num_partials * n_pad * n_pad * 4,
        ),
    )(feats)
    return out.reshape(num_partials, n_pad, n_pad)


def gram_matrix(x, use_bf16=False):
    """x: (a, b, c, d) NCHW -> Gram matrix (a*b, a*b), float32."""
    a, b, c, d = x.shape
    feats, n, m, n_pad, m_pad, tk, kt, P, vmem_cap = _prep_features(x, use_bf16)
    inv_denom = 1.0 / float(a * b * c * d)
    partials = _call_gram_kernel(feats, n_pad, tk, kt, P, inv_denom, vmem_cap)
    g = partials[0] if P == 1 else jnp.sum(partials, axis=0)
    return g[:n, :n]


# --------------------------------------------------------------------------
# Kernel 2 (single-core fused forward): Gram of the input + MSE vs. target.
# --------------------------------------------------------------------------
def _style_loss_fused_kernel(feat_ref, tgt_ref, loss_ref, acc_ref,
                             *, inv_denom, inv_nsq):
    k = pl.program_id(0)

    @pl.when(k == 0)
    def _():
        acc_ref[...] = jnp.zeros_like(acc_ref)

    f = feat_ref[...]
    acc_ref[...] += lax.dot_general(
        f, f,
        dimension_numbers=(((1,), (1,)), ((), ())),
        preferred_element_type=jnp.float32,
    )

    # MSE (and the 1/(a*b*c*d) scale) only on the final reduction step.
    @pl.when(k == pl.num_programs(0) - 1)
    def _():
        diff = acc_ref[...] * inv_denom - tgt_ref[...]
        # Padded rows/cols are zero in both operands (add nothing); divide by
        # the *unpadded* n*n (== F.mse_loss 'mean' reduction).
        loss_ref[...] = jnp.sum(diff * diff, keepdims=True) * inv_nsq


def style_loss(x, target_gram, use_bf16=False):
    """x: (a, b, c, d) NCHW, target_gram: (a*b, a*b) -> scalar MSE loss."""
    a, b, c, d = x.shape
    feats, n, m, n_pad, m_pad, tk, kt, P, vmem_cap = _prep_features(x, use_bf16)
    inv_denom = 1.0 / float(a * b * c * d)
    tgt = target_gram.astype(jnp.float32)

    if P > 1:
        # Two-TensorCore path (v7x): per-core partial Grams in the kernel;
        # the O(n^2) partial-sum + MSE epilogue stays in XLA -- negligible
        # next to the O(n^2 * m) feature streaming done in the kernel.
        partials = _call_gram_kernel(feats, n_pad, tk, kt, P, inv_denom, vmem_cap)
        g = jnp.sum(partials, axis=0)[:n, :n]
        return jnp.mean(jnp.square(g - tgt))

    # Single-core path: fuse the MSE epilogue into the Gram kernel.
    itemsize = jnp.dtype(feats.dtype).itemsize
    if n_pad != n:
        tgt = jnp.pad(tgt, ((0, n_pad - n), (0, n_pad - n)))

    loss = pl.pallas_call(
        partial(_style_loss_fused_kernel,
                inv_denom=inv_denom, inv_nsq=1.0 / float(n * n)),
        out_shape=jax.ShapeDtypeStruct((1, 1), jnp.float32),
        grid_spec=pltpu.PrefetchScalarGridSpec(
            num_scalar_prefetch=0,
            grid=(kt,),
            in_specs=[
                pl.BlockSpec((n_pad, tk), lambda k: (0, k)),        # features
                # Constant block index -> the pipeline fetches the target Gram
                # once; its idle second VMEM buffer is covered by the budget.
                # TODO(synk): single-buffer it (pipeline_mode=pl.Buffered(1))
                # once validated across all target generations.
                pl.BlockSpec((n_pad, n_pad), lambda k: (0, 0)),     # target
            ],
            out_specs=pl.BlockSpec((1, 1), lambda k: (0, 0)),
            scratch_shapes=[pltpu.VMEM((n_pad, n_pad), jnp.float32)],
        ),
        compiler_params=pltpu.CompilerParams(
            dimension_semantics=("arbitrary",),      # K is a reduction axis
            vmem_limit_bytes=_vmem_limit_bytes(
                n_pad, tk, itemsize, 3 * n_pad * n_pad * 4, vmem_cap),
        ),
        cost_estimate=pl.CostEstimate(
            flops=2 * n_pad * n_pad * m_pad + 3 * n_pad * n_pad,
            transcendentals=0,
            bytes_accessed=feats.size * itemsize + n_pad * n_pad * 4 + 4,
        ),
    )(feats, tgt)
    return loss[0, 0]


# --------------------------------------------------------------------------
# Module-equivalent wrapper (mirrors nn.Module StyleLoss semantics).
# --------------------------------------------------------------------------
class StyleLoss:
    def __init__(self, target_feature, use_bf16=False):
        # target = gram_matrix(target_feature).detach()
        self.use_bf16 = use_bf16
        self.target = jax.lax.stop_gradient(
            gram_matrix(target_feature, use_bf16=use_bf16))
        self.loss = None

    def __call__(self, x):
        # forward: compute MSE(gram(x), target), return x unchanged
        self.loss = style_loss(x, self.target, use_bf16=self.use_bf16)
        return x

# TODO(synk): for very large n = a*b (>= ~1024, compute-bound regime) also
# tile the (n, n) Gram output and exploit symmetry (skip j > i blocks);
# typical style-transfer channel counts (n in 64..512) are HBM-bound and fit
# the resident n^2 f32 accumulator easily, so this path is intentionally
# not implemented.


if __name__ == "__main__":
    key = jax.random.PRNGKey(0)
    k1, k2 = jax.random.split(key)

    # small NCHW shapes: batch=2, channels=4, spatial=16
    target_feature = jax.random.normal(k1, (2, 4, 16, 16), dtype=jnp.float32)
    x = jax.random.normal(k2, (2, 4, 16, 16), dtype=jnp.float32)

    module = StyleLoss(target_feature)
    out = module(x)
    out = jax.block_until_ready(out)
    loss = jax.block_until_ready(module.loss)

    # reference check in plain JAX
    def ref_gram(t):
        a, b, c, d = t.shape
        f = t.reshape(a * b, c * d)
        return (f @ f.T) / (a * b * c * d)

    ref_loss = jnp.mean((ref_gram(x) - ref_gram(target_feature)) ** 2)
    assert out.shape == x.shape
    assert jnp.allclose(out, x)
    assert jnp.allclose(loss, ref_loss, rtol=1e-5, atol=1e-6)

    print("KERNEL_OK")
</pallas_src>

<mosaic_0001>
module attributes {stable_mosaic.version = 11 : i64} {
  func.func @_gram_partial_kernel(%arg0: i32, %arg1: i32, %arg2: memref<8x256xf32, #tpu.memory_space<vmem>>, %arg3: memref<8x8xf32, #tpu.memory_space<vmem>>, %arg4: memref<8x8xf32, #tpu.memory_space<vmem>>) attributes {dimension_semantics = [#tpu.dimension_semantics<parallel>, #tpu.dimension_semantics<arbitrary>], iteration_bounds = array<i64: 1, 1>, scalar_prefetch = 0 : i64, scratch_operands = 1 : i64, tpu.core_type = #tpu.core_type<tc>, window_params = [{transform_indices = @transform_0, window_bounds = array<i64: 8, 256>}, {transform_indices = @transform_1, window_bounds = array<i64: 8, 8>}]} {
    %c0_i32 = arith.constant 0 : i32
    %0 = arith.cmpi eq, %arg1, %c0_i32 : i32
    %1 = arith.extui %0 : i1 to i32
    %c0_i32_0 = arith.constant 0 : i32
    %2 = arith.cmpi ne, %1, %c0_i32_0 : i32
    scf.if %2 {
      %cst_8 = arith.constant 0.000000e+00 : f32
      %11 = vector.broadcast %cst_8 : f32 to vector<8x8xf32>
      %c0_9 = arith.constant 0 : index
      %c0_10 = arith.constant 0 : index
      %12 = vector.load %arg4[%c0_9, %c0_10] : memref<8x8xf32, #tpu.memory_space<vmem>>, vector<8x8xf32>
      tpu.vector_store %arg4[%c0_9, %c0_10], %11 {strides = array<i32>} : memref<8x8xf32, #tpu.memory_space<vmem>>, vector<8x8xf32>,
    } else {
    }
    %c0 = arith.constant 0 : index
    %c0_1 = arith.constant 0 : index
    %3 = vector.load %arg2[%c0, %c0_1] : memref<8x256xf32, #tpu.memory_space<vmem>>, vector<8x256xf32>
    %c0_2 = arith.constant 0 : index
    %c0_3 = arith.constant 0 : index
    %4 = vector.load %arg4[%c0_2, %c0_3] : memref<8x8xf32, #tpu.memory_space<vmem>>, vector<8x8xf32>
    %cst = arith.constant dense<0.000000e+00> : vector<8x8xf32>
    %5 = tpu.matmul %3, %3, %cst {dimension_numbers = #tpu.dot_dimension_numbers<[1], [1], [0], [0], [0, 0, 1, 0], [], []>} : vector<8x256xf32>, vector<8x256xf32>, vector<8x8xf32> -> vector<8x8xf32>
    %6 = arith.addf %4, %5 : vector<8x8xf32>
    %c0_4 = arith.constant 0 : index
    %c0_5 = arith.constant 0 : index
    %7 = vector.load %arg4[%c0_4, %c0_5] : memref<8x8xf32, #tpu.memory_space<vmem>>, vector<8x8xf32>
    tpu.vector_store %arg4[%c0_4, %c0_5], %6 {strides = array<i32>} : memref<8x8xf32, #tpu.memory_space<vmem>>, vector<8x8xf32>,
    %c0_i32_6 = arith.constant 0 : i32
    %8 = arith.cmpi eq, %arg1, %c0_i32_6 : i32
    %9 = arith.extui %8 : i1 to i32
    %c0_i32_7 = arith.constant 0 : i32
    %10 = arith.cmpi ne, %9, %c0_i32_7 : i32
    scf.if %10 {
      %c0_8 = arith.constant 0 : index
      %c0_9 = arith.constant 0 : index
      %11 = vector.load %arg4[%c0_8, %c0_9] : memref<8x8xf32, #tpu.memory_space<vmem>>, vector<8x8xf32>
      %cst_10 = arith.constant 4.8828125E-4 : f32
      %12 = vector.broadcast %cst_10 : f32 to vector<8x8xf32>
      %13 = arith.mulf %11, %12 : vector<8x8xf32>
      %c0_11 = arith.constant 0 : index
      %c0_12 = arith.constant 0 : index
      %14 = vector.load %arg3[%c0_11, %c0_12] : memref<8x8xf32, #tpu.memory_space<vmem>>, vector<8x8xf32>
      tpu.vector_store %arg3[%c0_11, %c0_12], %13 {strides = array<i32>} : memref<8x8xf32, #tpu.memory_space<vmem>>, vector<8x8xf32>,
    } else {
    }
    return
  }
  func.func @transform_0(%arg0: i32, %arg1: i32) -> (i32, i32) {
    %c1_i32 = arith.constant 1 : i32
    %0 = arith.muli %arg0, %c1_i32 : i32
    %1 = arith.addi %0, %arg1 : i32
    %c0_i32 = arith.constant 0 : i32
    %c0_i32_0 = arith.constant 0 : i32
    return %c0_i32, %1 : i32, i32
  }
  func.func @transform_1(%arg0: i32, %arg1: i32) -> (i32, i32) {
    %c0_i32 = arith.constant 0 : i32
    %c0_i32_0 = arith.constant 0 : i32
    return %arg0, %c0_i32 : i32, i32
  }
}

</mosaic_0001>

<llo_original>
// kernel: tpu_custom_call.1
$region0: #{tpu_custom_call.1}
  #allocation0 [shape = 'u32[]', space=smem, size = 0x4, offset = 0x4, fixed_abs, tag = 'smem constant byte address 0x4 - core index']
  #allocation1 [shape = 'u32[144,128]{1,0:T(1,128)}', space=vmem, size = 0x12000, scoped, tag = 'internal scratch']
  #allocation2 [shape = 'f32[8,8]{1,0:T(8,128)}', space=vmem, size = 0x1000, scoped, tag = 'scratch operand']
  %s0 = inlined_call_operand.hbm [shape: f32[8,256], index: 0, kind: input, shape index: {}]
  %s1 = inlined_call_operand.hbm [shape: f32[8,8], index: 1, kind: output, shape index: {}]
  %s2 = sld [smem:[#allocation0]]
  $region26: #{tpu_custom_call.1} parent=0
    _
  %s4 = ssub.s32 1, %s2
  %s5 = scalar_select 0, %s4, %s2
  $region1: #{tpu_custom_call.1} parent=0
    #allocation3 [shape = 'u8[8192]{0}', space=vmem, size = 0x2000, scoped, tag = 'input window, operand 0, single buffered']
    #allocation4 [shape = 's32[1]{0}', space=sflag, size = 0x4, scoped, tag = 'scoped memory for tpu_custom_call.1']
    #allocation5 [shape = 's32[1]{0}', space=sflag, size = 0x4, scoped, tag = 'scoped memory for tpu_custom_call.1']
    #allocation6 [shape = 'u8[4096]{0}', space=vmem, size = 0x1000, scoped, tag = 'output window, operand 0, single buffered']
    %6 = vsyncpa [#allocation4], 0
    %7 = vsyncpa [#allocation5], 0
    // Predicated region
    $region2: #{tpu_custom_call.1} parent=1 // pred_check
      _
    $region3: #{tpu_custom_call.1} parent=1 // pred_check_branch
      %9 = sbr.rel (0) target = $region5
    $region4: #{tpu_custom_call.1} parent=1 // pred_region
      %s10 = sadd.s32 0, 0
      %s11 = smul.u32 2, %s10
      %s13 = ssub.s32 256, 256
      %14 = vsyncadd [#allocation4], %s13
      %s15 = smul.addr %s11, 128
      %s16 = scalar_lea.hbm %s0, %s15
      %s18 = sshll.u32 [#allocation3], 4
      %s19 = int_to_ptr.vmem [resolvable:$true] %s18
      %21 = dma.hbm_to_vmem [thread:$0]  %s16, 256, %s19, [#allocation4]
    $region5: #{tpu_custom_call.1} parent=1 // pred_fallthru
      _
    // Predicated region
    $region6: #{tpu_custom_call.1} parent=1 // pred_check
      _
    $region7: #{tpu_custom_call.1} parent=1 // pred_check_branch
      %23 = sbr.rel (0) target = $region9
    $region8: #{tpu_custom_call.1} parent=1 // pred_region
      %24 = dma.done [#allocation4], 256
    $region9: #{tpu_custom_call.1} parent=1 // pred_fallthru
      _
    %s25 = sadd.s32 0, 0
    %s26 = smul.u32 2, %s25
    %p27 = scmp.eq.s32.totalorder 0, 0
    // Predicated region
    $region10: #{tpu_custom_call.1} parent=1 // pred_check
      %p28 = pneg %p27
    $region11: #{tpu_custom_call.1} parent=1 // pred_check_branch
      %30 = sbr.rel (%p28) target = $region13
    $region12: #{tpu_custom_call.1} parent=1 // pred_region
      %vm31 = vcmask 64512
      %32 = vst.msk [vmem:[#allocation2] sm:$0xff] %vm31, 0.0
    $region13: #{tpu_custom_call.1} parent=1 // pred_fallthru
      _
    %v33 = vld [vmem:[#allocation3] sm:$0xff]
    %v34 = vld [vmem:[#allocation3 + $0x8] sm:$0xff]
    %v35 = vld [vmem:[#allocation2] sm:$0xff]
    %36 = vmatprep.subr.mxu0 %v34
    %37 = vmatpush1.xpose.msra.mxu0 %v33
    %38 = vmatprep.subr.mxu0 0.0
    %39 = vmatpush1.xpose.msra.mxu0 0.0
    %40 = vmatprep.subr.mxu0 0.0
    %41 = vmatpush1.xpose.msra.mxu0 0.0
    %42 = vmatprep.subr.mxu0 0.0
    %43 = vmatpush1.xpose.msra.mxu0 0.0
    %44 = vmatprep.subr.mxu0 0.0
    %45 = vmatpush1.xpose.msra.mxu0 0.0
    %46 = vmatprep.subr.mxu0 0.0
    %47 = vmatpush1.xpose.msra.mxu0 0.0
    %48 = vmatprep.subr.mxu0 0.0
    %49 = vmatpush1.xpose.msra.mxu0 0.0
    %50 = vmatprep.subr.mxu0 0.0
    %51 = vmatpush1.xpose.msra.mxu0 0.0
    %52 = vmatprep.subr.mxu0 0.0
    %53 = vmatpush1.xpose.msra.mxu0 0.0
    %54 = vmatprep.subr.mxu0 0.0
    %55 = vmatpush1.xpose.msra.mxu0 0.0
    %56 = vmatprep.subr.mxu0 0.0
    %57 = vmatpush1.xpose.msra.mxu0 0.0
    %58 = vmatprep.subr.mxu0 0.0
    %59 = vmatpush1.xpose.msra.mxu0 0.0
    %60 = vmatprep.subr.mxu0 0.0
    %61 = vmatpush1.xpose.msra.mxu0 0.0
    %62 = vmatprep.subr.mxu0 0.0
    %63 = vmatpush1.xpose.msra.mxu0 0.0
    %64 = vmatprep.subr.mxu0 0.0
    %65 = vmatpush1.xpose.msra.mxu0 0.0
    %66 = vmatprep.subr.mxu0 0.0
    %67 = vmatpush1.xpose.msra.mxu0 0.0
    %68 = vmatprep.subr.mxu0 0.0
    %69 = vmatpush1.xpose.msra.mxu0 0.0
    %70 = vmatprep.subr.mxu0 0.0
    %71 = vmatpush1.xpose.msra.mxu0 0.0
    %72 = vmatprep.subr.mxu0 0.0
    %73 = vmatpush1.xpose.msra.mxu0 0.0
    %74 = vmatprep.subr.mxu0 0.0
    %75 = vmatpush1.xpose.msra.mxu0 0.0
    %76 = vmatprep.subr.mxu0 0.0
    %77 = vmatpush1.xpose.msra.mxu0 0.0
    %78 = vmatprep.subr.mxu0 0.0
    %79 = vmatpush1.xpose.msra.mxu0 0.0
    %80 = vmatprep.subr.mxu0 0.0
    %81 = vmatpush1.xpose.msra.mxu0 0.0
    %82 = vmatprep.subr.mxu0 0.0
    %83 = vmatpush1.xpose.msra.mxu0 0.0
    %84 = vmatprep.subr.mxu0 0.0
    %85 = vmatpush1.xpose.msra.mxu0 0.0
    %86 = vmatprep.subr.mxu0 0.0
    %87 = vmatpush1.xpose.msra.mxu0 0.0
    %88 = vmatprep.subr.mxu0 0.0
    %89 = vmatpush1.xpose.msra.mxu0 0.0
    %90 = vmatprep.subr.mxu0 0.0
    %91 = vmatpush1.xpose.msra.mxu0 0.0
    %92 = vmatprep.subr.mxu0 0.0
    %93 = vmatpush1.xpose.msra.mxu0 0.0
    %94 = vmatprep.subr.mxu0 0.0
    %95 = vmatpush1.xpose.msra.mxu0 0.0
    %96 = vmatprep.subr.mxu0 0.0
    %97 = vmatpush1.xpose.msra.mxu0 0.0
    %98 = vmatprep.subr.mxu0 0.0
    %99 = vmatpush1.xpose.msra.mxu0 0.0
    %100 = vmatprep.mubr.f32.mxu0 %v34
    %101 = vmatmul.mubr.f32.gmra.mrb[0].mxu0 %v33
    %v102 = vpop.f32.mrb[0].mxu0
    %v103 = vadd.f32 0.0, %v102
    %v104 = vpop.f32.mrb[0].mxu0
    %105 = vdwg.mxu0
    %v106 = vadd.f32 %v35, %v103
    %vm107 = vcmask 64512
    %108 = vst.msk [vmem:[#allocation2] sm:$0xff] %vm107, %v106
    // Predicated region
    $region14: #{tpu_custom_call.1} parent=1 // pred_check
      %p109 = pneg %p27
    $region15: #{tpu_custom_call.1} parent=1 // pred_check_branch
      %111 = sbr.rel (%p109) target = $region17
    $region16: #{tpu_custom_call.1} parent=1 // pred_region
      %v112 = vld [vmem:[#allocation2] sm:$0xff]
      %v113 = vmul.f32 %v112, 0.00048828125
      %114 = vst.msk [vmem:[#allocation6] sm:$0xff] %vm107, %v113
    $region17: #{tpu_custom_call.1} parent=1 // pred_fallthru
      _
    // Predicated region
    $region18: #{tpu_custom_call.1} parent=1 // pred_check
      _
    $region19: #{tpu_custom_call.1} parent=1 // pred_check_branch
      %116 = sbr.rel (0) target = $region21
    $region20: #{tpu_custom_call.1} parent=1 // pred_region
      %s118 = ssub.s32 128, 128
      %119 = vsyncadd [#allocation5], %s118
      %s121 = sshll.u32 [#allocation6], 4
      %s122 = int_to_ptr.vmem [resolvable:$true] %s121
      %124 = dma.vmem_to_hbm [thread:$0]  %s122, 128, %s1, [#allocation5]
    $region21: #{tpu_custom_call.1} parent=1 // pred_fallthru
      _
    // Predicated region
    $region22: #{tpu_custom_call.1} parent=1 // pred_check
      _
    $region23: #{tpu_custom_call.1} parent=1 // pred_check_branch
      %126 = sbr.rel (0) target = $region25
    $region24: #{tpu_custom_call.1} parent=1 // pred_region
      %127 = dma.done [#allocation5], 128
    $region25: #{tpu_custom_call.1} parent=1 // pred_fallthru
      _
    %128 = vsyncpa [#allocation4], 1
    %129 = vsyncpa [#allocation5], 1

</llo_original>
